<compile_context>
chip_gen: v5e
topology: v5e:2x2
jax: 0.10.0
libtpu: 0.0.40
codegen_flags: <defaults>
</compile_context>

<pallas_src>
import functools

import jax
import jax.numpy as jnp
from jax.experimental import pallas as pl
from jax.experimental.pallas import tpu as pltpu


def _round_up(x, m):
    return -(-x // m) * m


def _fastspeech_loss_kernel(mel_ref, melp_ref, melt_ref, dur_ref, durt_ref,
                            out_ref, acc_mel_ref, acc_melp_ref,
                            *, min_len, chunk_t, n_mel_elems, n_dur_elems):
    step = pl.program_id(0)

    @pl.when(step == 0)
    def _init():
        acc_mel_ref[...] = jnp.zeros_like(acc_mel_ref)
        acc_melp_ref[...] = jnp.zeros_like(acc_melp_ref)

    b, tile_t, n_mel = mel_ref.shape
    n_chunks = tile_t // chunk_t
    t_base = step * tile_t

    # Hoisted once per grid step (JAX does not CSE broadcast/iota in loops).
    t_idx = jax.lax.broadcasted_iota(jnp.int32, (b, chunk_t, n_mel), 1)

    def fold(d):
        # (b, chunk_t, n_mel) f32 -> (8, n_mel) vreg-shaped partial (VPU only).
        return d.reshape(b * chunk_t // 8, 8, n_mel).sum(axis=0)

    def chunk_body(c, carry):
        acc_m, acc_p = carry
        start = pl.multiple_of(c * chunk_t, chunk_t)
        sl = pl.ds(start, chunk_t)
        melt = melt_ref[:, sl, :]
        dm = jnp.abs(mel_ref[:, sl, :] - melt)     # input dtype
        dp = jnp.abs(melp_ref[:, sl, :] - melt)
        # Mask time positions >= min_len: covers the beyond-cut region of the
        # longer tensors and the undefined tail of the final ragged tile.
        valid = (t_base + c * chunk_t + t_idx) < min_len
        dm = jnp.where(valid, dm, 0).astype(jnp.float32)
        dp = jnp.where(valid, dp, 0).astype(jnp.float32)
        return acc_m + fold(dm), acc_p + fold(dp)

    zero = jnp.zeros(acc_mel_ref.shape, jnp.float32)
    pm, pp = jax.lax.fori_loop(0, n_chunks, chunk_body, (zero, zero))
    acc_mel_ref[...] += pm
    acc_melp_ref[...] += pp

    @pl.when(step == pl.num_programs(0) - 1)
    def _finalize():
        inv_mel = 1.0 / float(n_mel_elems)
        out_ref[0] = jnp.sum(acc_mel_ref[...]) * inv_mel
        out_ref[1] = jnp.sum(acc_melp_ref[...]) * inv_mel

        # duration_predictor_loss = MSE(dur_pred, log(dur_target + 1)).
        dur = dur_ref[...].astype(jnp.float32)
        durt = jnp.log1p(durt_ref[...].astype(jnp.float32))
        diff = dur - durt
        out_ref[2] = jnp.sum(diff * diff) * (1.0 / float(n_dur_elems))


def fastspeech_loss(mel, mel_postnet, duration_predictor,
                    mel_target, duration_predictor_target,
                    *, target_tile_bytes=2 << 20):
    B, _, n_mel = mel.shape
    min_len = min(mel.shape[1], mel_postnet.shape[1], mel_target.shape[1])

    n_mel_elems = B * min_len * n_mel
    n_dur_elems = int(duration_predictor.size)

    itemsize = jnp.dtype(mel.dtype).itemsize
    bytes_per_row = B * n_mel * itemsize            # one time step across batch

    # Inner fold chunk (rows of T): multiple of 8, ~<=256 KiB working set.
    chunk_t = max(8, min(64, ((256 * 1024) // max(bytes_per_row, 1)) // 8 * 8))
    # Grid tile (rows of T): multiple of chunk_t, ~target_tile_bytes per input,
    # capped by min_len so tiny inputs stay tiny.
    tile_t = max(chunk_t,
                 (target_tile_bytes // max(bytes_per_row, 1)) // chunk_t * chunk_t)
    tile_t = min(tile_t, _round_up(min_len, chunk_t))
    n_blocks = pl.cdiv(min_len, tile_t)

    # Advisory cost: mem-bound.
    bytes_accessed = ((mel.size + mel_postnet.size + mel_target.size) * itemsize
                      + duration_predictor.size
                      * jnp.dtype(duration_predictor.dtype).itemsize
                      + duration_predictor_target.size
                      * jnp.dtype(duration_predictor_target.dtype).itemsize
                      + 3 * 4)
    cost = pl.CostEstimate(flops=5 * n_mel_elems + 4 * n_dur_elems,
                           transcendentals=n_dur_elems,
                           bytes_accessed=int(bytes_accessed))

    kernel = functools.partial(_fastspeech_loss_kernel,
                               min_len=min_len,
                               chunk_t=chunk_t,
                               n_mel_elems=n_mel_elems,
                               n_dur_elems=n_dur_elems)

    mel_spec = pl.BlockSpec((B, tile_t, n_mel), lambda i: (0, i, 0))
    dur_spec = pl.BlockSpec(duration_predictor.shape,
                            lambda i: (0,) * duration_predictor.ndim)
    durt_spec = pl.BlockSpec(duration_predictor_target.shape,
                             lambda i: (0,) * duration_predictor_target.ndim)

    out = pl.pallas_call(
        kernel,
        out_shape=jax.ShapeDtypeStruct((3,), jnp.float32),
        grid=(n_blocks,),
        in_specs=[mel_spec, mel_spec, mel_spec, dur_spec, durt_spec],
        out_specs=pl.BlockSpec(memory_space=pltpu.MemorySpace.SMEM),
        scratch_shapes=[pltpu.VMEM((8, n_mel), jnp.float32),
                        pltpu.VMEM((8, n_mel), jnp.float32)],
        compiler_params=pltpu.CompilerParams(
            dimension_semantics=("arbitrary",),
            vmem_limit_bytes=32 << 20),
        cost_estimate=cost,
    )(mel, mel_postnet, mel_target, duration_predictor,
      duration_predictor_target)

    return out[0], out[1], out[2]


def _reference(mel, mel_postnet, duration_predictor,
               mel_target, duration_predictor_target):
    min_len = min(mel.shape[1], mel_postnet.shape[1], mel_target.shape[1])
    mel = mel[:, :min_len, :]
    mel_postnet = mel_postnet[:, :min_len, :]
    mel_target = mel_target[:, :min_len, :]
    mel_loss = jnp.mean(jnp.abs(mel - mel_target))
    melp_loss = jnp.mean(jnp.abs(mel_postnet - mel_target))
    durt = jnp.log(duration_predictor_target + 1.0)
    dur_loss = jnp.mean((duration_predictor - durt) ** 2)
    return mel_loss, melp_loss, dur_loss


if __name__ == "__main__":
    key = jax.random.PRNGKey(0)
    k1, k2, k3, k4, k5 = jax.random.split(key, 5)

    B, T_pred, T_tgt, N_MEL, L = 2, 10, 9, 32, 8

    mel = jax.random.normal(k1, (B, T_pred, N_MEL), dtype=jnp.float32)
    mel_postnet = jax.random.normal(k2, (B, T_pred, N_MEL), dtype=jnp.float32)
    mel_target = jax.random.normal(k3, (B, T_tgt, N_MEL), dtype=jnp.float32)
    duration_predictor = jax.random.normal(k4, (B, L), dtype=jnp.float32)
    # durations are non-negative (log(x+1) must be well-defined)
    duration_predictor_target = jax.random.uniform(
        k5, (B, L), dtype=jnp.float32, minval=0.0, maxval=5.0)

    out = fastspeech_loss(mel, mel_postnet, duration_predictor,
                          mel_target, duration_predictor_target)
    out = jax.block_until_ready(out)

    ref = _reference(mel, mel_postnet, duration_predictor,
                     mel_target, duration_predictor_target)

    for got, want in zip(out, ref):
        assert jnp.allclose(got, want, rtol=1e-5, atol=1e-5), (got, want)

    print("KERNEL_OK")
</pallas_src>

<mosaic_0001>
module attributes {stable_mosaic.version = 11 : i64} {
  func.func @_fastspeech_loss_kernel(%arg0: i32, %arg1: memref<2x64x32xf32, #tpu.memory_space<vmem>>, %arg2: memref<2x64x32xf32, #tpu.memory_space<vmem>>, %arg3: memref<2x64x32xf32, #tpu.memory_space<vmem>>, %arg4: memref<2x8xf32, #tpu.memory_space<vmem>>, %arg5: memref<2x8xf32, #tpu.memory_space<vmem>>, %arg6: memref<3xf32, #tpu.memory_space<smem>>, %arg7: memref<8x32xf32, #tpu.memory_space<vmem>>, %arg8: memref<8x32xf32, #tpu.memory_space<vmem>>) attributes {dimension_semantics = [#tpu.dimension_semantics<arbitrary>], iteration_bounds = array<i64: 1>, scalar_prefetch = 0 : i64, scratch_operands = 2 : i64, tpu.core_type = #tpu.core_type<tc>, window_params = [{transform_indices = @transform_0, window_bounds = array<i64: 2, 64, 32>}, {transform_indices = @transform_1, window_bounds = array<i64: 2, 64, 32>}, {transform_indices = @transform_2, window_bounds = array<i64: 2, 64, 32>}, {pipeline_mode = #tpu.pipeline_mode<synchronous>, transform_indices = @transform_3, window_bounds = array<i64: 2, 8>}, {pipeline_mode = #tpu.pipeline_mode<synchronous>, transform_indices = @transform_4, window_bounds = array<i64: 2, 8>}, {transform_indices = @transform_5, window_bounds = array<i64: 3>}]} {
    %c0_i32 = arith.constant 0 : i32
    %0 = arith.cmpi eq, %arg0, %c0_i32 : i32
    %1 = arith.extui %0 : i1 to i32
    %c0_i32_0 = arith.constant 0 : i32
    %2 = arith.cmpi ne, %1, %c0_i32_0 : i32
    scf.if %2 {
      %cst_23 = arith.constant 0.000000e+00 : f32
      %45 = vector.broadcast %cst_23 : f32 to vector<8x32xf32>
      %c0_24 = arith.constant 0 : index
      %c0_25 = arith.constant 0 : index
      %46 = vector.load %arg7[%c0_24, %c0_25] : memref<8x32xf32, #tpu.memory_space<vmem>>, vector<8x32xf32>
      tpu.vector_store %arg7[%c0_24, %c0_25], %45 {strides = array<i32>} : memref<8x32xf32, #tpu.memory_space<vmem>>, vector<8x32xf32>,
      %cst_26 = arith.constant 0.000000e+00 : f32
      %47 = vector.broadcast %cst_26 : f32 to vector<8x32xf32>
      %c0_27 = arith.constant 0 : index
      %c0_28 = arith.constant 0 : index
      %48 = vector.load %arg8[%c0_27, %c0_28] : memref<8x32xf32, #tpu.memory_space<vmem>>, vector<8x32xf32>
      tpu.vector_store %arg8[%c0_27, %c0_28], %47 {strides = array<i32>} : memref<8x32xf32, #tpu.memory_space<vmem>>, vector<8x32xf32>,
    } else {
    }
    %c64_i32 = arith.constant 64 : i32
    %3 = arith.muli %arg0, %c64_i32 : i32
    %4 = tpu.iota {dimensions = array<i32: 1>} : vector<2x64x32xi32>
    %cst = arith.constant 0.000000e+00 : f32
    %5 = vector.broadcast %cst : f32 to vector<8x32xf32>
    %c0_i32_1 = arith.constant 0 : i32
    %c64_i32_2 = arith.constant 64 : i32
    %6 = arith.muli %c0_i32_1, %c64_i32_2 : i32
    %7 = tpu.assume_multiple %6, 64 : i32
    %c0 = arith.constant 0 : index
    %8 = arith.index_cast %7 : i32 to index
    %c0_3 = arith.constant 0 : index
    %9 = vector.load %arg3[%c0, %8, %c0_3] : memref<2x64x32xf32, #tpu.memory_space<vmem>>, vector<2x64x32xf32>
    %c0_4 = arith.constant 0 : index
    %10 = arith.index_cast %7 : i32 to index
    %c0_5 = arith.constant 0 : index
    %11 = vector.load %arg1[%c0_4, %10, %c0_5] : memref<2x64x32xf32, #tpu.memory_space<vmem>>, vector<2x64x32xf32>
    %12 = arith.subf %11, %9 : vector<2x64x32xf32>
    %13 = math.absf %12 : vector<2x64x32xf32>
    %c0_6 = arith.constant 0 : index
    %14 = arith.index_cast %7 : i32 to index
    %c0_7 = arith.constant 0 : index
    %15 = vector.load %arg2[%c0_6, %14, %c0_7] : memref<2x64x32xf32, #tpu.memory_space<vmem>>, vector<2x64x32xf32>
    %16 = arith.subf %15, %9 : vector<2x64x32xf32>
    %17 = math.absf %16 : vector<2x64x32xf32>
    %c64_i32_8 = arith.constant 64 : i32
    %18 = arith.muli %c0_i32_1, %c64_i32_8 : i32
    %19 = arith.addi %3, %18 : i32
    %20 = vector.broadcast %19 : i32 to vector<2x64x32xi32>
    %21 = arith.addi %20, %4 : vector<2x64x32xi32>
    %c9_i32 = arith.constant 9 : i32
    %22 = vector.broadcast %c9_i32 : i32 to vector<2x64x32xi32>
    %23 = arith.cmpi slt, %21, %22 : vector<2x64x32xi32>
    %c0_i32_9 = arith.constant 0 : i32
    %24 = arith.sitofp %c0_i32_9 : i32 to f32
    %25 = vector.broadcast %24 : f32 to vector<2x64x32xf32>
    %26 = arith.select %23, %13, %25 : vector<2x64x32xi1>, vector<2x64x32xf32>
    %c0_i32_10 = arith.constant 0 : i32
    %27 = arith.sitofp %c0_i32_10 : i32 to f32
    %28 = vector.broadcast %27 : f32 to vector<2x64x32xf32>
    %29 = arith.select %23, %17, %28 : vector<2x64x32xi1>, vector<2x64x32xf32>
    %30 = vector.shape_cast %26 : vector<2x64x32xf32> to vector<16x8x32xf32>
    %cst_11 = arith.constant dense<0.000000e+00> : vector<8x32xf32>
    %31 = vector.multi_reduction <add>, %30, %cst_11 [0] : vector<16x8x32xf32> to vector<8x32xf32>
    %32 = arith.addf %5, %31 : vector<8x32xf32>
    %33 = vector.shape_cast %29 : vector<2x64x32xf32> to vector<16x8x32xf32>
    %cst_12 = arith.constant dense<0.000000e+00> : vector<8x32xf32>
    %34 = vector.multi_reduction <add>, %33, %cst_12 [0] : vector<16x8x32xf32> to vector<8x32xf32>
    %35 = arith.addf %5, %34 : vector<8x32xf32>
    %c1_i32 = arith.constant 1 : i32
    %c0_13 = arith.constant 0 : index
    %c0_14 = arith.constant 0 : index
    %36 = vector.load %arg7[%c0_13, %c0_14] : memref<8x32xf32, #tpu.memory_space<vmem>>, vector<8x32xf32>
    %37 = arith.addf %36, %32 : vector<8x32xf32>
    %c0_15 = arith.constant 0 : index
    %c0_16 = arith.constant 0 : index
    %38 = vector.load %arg7[%c0_15, %c0_16] : memref<8x32xf32, #tpu.memory_space<vmem>>, vector<8x32xf32>
    tpu.vector_store %arg7[%c0_15, %c0_16], %37 {strides = array<i32>} : memref<8x32xf32, #tpu.memory_space<vmem>>, vector<8x32xf32>,
    %c0_17 = arith.constant 0 : index
    %c0_18 = arith.constant 0 : index
    %39 = vector.load %arg8[%c0_17, %c0_18] : memref<8x32xf32, #tpu.memory_space<vmem>>, vector<8x32xf32>
    %40 = arith.addf %39, %35 : vector<8x32xf32>
    %c0_19 = arith.constant 0 : index
    %c0_20 = arith.constant 0 : index
    %41 = vector.load %arg8[%c0_19, %c0_20] : memref<8x32xf32, #tpu.memory_space<vmem>>, vector<8x32xf32>
    tpu.vector_store %arg8[%c0_19, %c0_20], %40 {strides = array<i32>} : memref<8x32xf32, #tpu.memory_space<vmem>>, vector<8x32xf32>,
    %c0_i32_21 = arith.constant 0 : i32
    %42 = arith.cmpi eq, %arg0, %c0_i32_21 : i32
    %43 = arith.extui %42 : i1 to i32
    %c0_i32_22 = arith.constant 0 : i32
    %44 = arith.cmpi ne, %43, %c0_i32_22 : i32
    scf.if %44 {
      %c0_23 = arith.constant 0 : index
      %c0_24 = arith.constant 0 : index
      %45 = vector.load %arg7[%c0_23, %c0_24] : memref<8x32xf32, #tpu.memory_space<vmem>>, vector<8x32xf32>
      %46 = vector.shape_cast %45 : vector<8x32xf32> to vector<1x8x32xf32>
      %cst_25 = arith.constant dense<0.000000e+00> : vector<1xf32>
      %47 = vector.multi_reduction <add>, %46, %cst_25 [1, 2] : vector<1x8x32xf32> to vector<1xf32>
      %48 = vector.shape_cast %47 : vector<1xf32> to vector<1x1x1xf32>
      %49 = vector.extract %48[0, 0, 0] : f32 from vector<1x1x1xf32>
      %cst_26 = arith.constant 0.00173611112 : f32
      %50 = arith.mulf %49, %cst_26 : f32
      %c0_27 = arith.constant 0 : index
      %51 = memref.load %arg6[%c0_27] : memref<3xf32, #tpu.memory_space<smem>>
      memref.store %50, %arg6[%c0_27] : memref<3xf32, #tpu.memory_space<smem>>
      %c0_28 = arith.constant 0 : index
      %c0_29 = arith.constant 0 : index
      %52 = vector.load %arg8[%c0_28, %c0_29] : memref<8x32xf32, #tpu.memory_space<vmem>>, vector<8x32xf32>
      %53 = vector.shape_cast %52 : vector<8x32xf32> to vector<1x8x32xf32>
      %cst_30 = arith.constant dense<0.000000e+00> : vector<1xf32>
      %54 = vector.multi_reduction <add>, %53, %cst_30 [1, 2] : vector<1x8x32xf32> to vector<1xf32>
      %55 = vector.shape_cast %54 : vector<1xf32> to vector<1x1x1xf32>
      %56 = vector.extract %55[0, 0, 0] : f32 from vector<1x1x1xf32>
      %cst_31 = arith.constant 0.00173611112 : f32
      %57 = arith.mulf %56, %cst_31 : f32
      %c1 = arith.constant 1 : index
      %58 = memref.load %arg6[%c1] : memref<3xf32, #tpu.memory_space<smem>>
      memref.store %57, %arg6[%c1] : memref<3xf32, #tpu.memory_space<smem>>
      %c0_32 = arith.constant 0 : index
      %c0_33 = arith.constant 0 : index
      %59 = vector.load %arg4[%c0_32, %c0_33] : memref<2x8xf32, #tpu.memory_space<vmem>>, vector<2x8xf32>
      %c0_34 = arith.constant 0 : index
      %c0_35 = arith.constant 0 : index
      %60 = vector.load %arg5[%c0_34, %c0_35] : memref<2x8xf32, #tpu.memory_space<vmem>>, vector<2x8xf32>
      %61 = math.log1p %60 : vector<2x8xf32>
      %62 = arith.subf %59, %61 : vector<2x8xf32>
      %63 = arith.mulf %62, %62 : vector<2x8xf32>
      %64 = vector.shape_cast %63 : vector<2x8xf32> to vector<1x2x8xf32>
      %cst_36 = arith.constant dense<0.000000e+00> : vector<1xf32>
      %65 = vector.multi_reduction <add>, %64, %cst_36 [1, 2] : vector<1x2x8xf32> to vector<1xf32>
      %66 = vector.shape_cast %65 : vector<1xf32> to vector<1x1x1xf32>
      %67 = vector.extract %66[0, 0, 0] : f32 from vector<1x1x1xf32>
      %cst_37 = arith.constant 6.250000e-02 : f32
      %68 = arith.mulf %67, %cst_37 : f32
      %c2 = arith.constant 2 : index
      %69 = memref.load %arg6[%c2] : memref<3xf32, #tpu.memory_space<smem>>
      memref.store %68, %arg6[%c2] : memref<3xf32, #tpu.memory_space<smem>>
    } else {
    }
    return
  }
  func.func @transform_0(%arg0: i32) -> (i32, i32, i32) {
    %c0_i32 = arith.constant 0 : i32
    %c0_i32_0 = arith.constant 0 : i32
    %c0_i32_1 = arith.constant 0 : i32
    return %c0_i32, %arg0, %c0_i32_0 : i32, i32, i32
  }
  func.func @transform_1(%arg0: i32) -> (i32, i32, i32) {
    %c0_i32 = arith.constant 0 : i32
    %c0_i32_0 = arith.constant 0 : i32
    %c0_i32_1 = arith.constant 0 : i32
    return %c0_i32, %arg0, %c0_i32_0 : i32, i32, i32
  }
  func.func @transform_2(%arg0: i32) -> (i32, i32, i32) {
    %c0_i32 = arith.constant 0 : i32
    %c0_i32_0 = arith.constant 0 : i32
    %c0_i32_1 = arith.constant 0 : i32
    return %c0_i32, %arg0, %c0_i32_0 : i32, i32, i32
  }
  func.func @transform_3(%arg0: i32) -> (i32, i32) {
    %c0_i32 = arith.constant 0 : i32
    %c0_i32_0 = arith.constant 0 : i32
    %c0_i32_1 = arith.constant 0 : i32
    return %c0_i32, %c0_i32_0 : i32, i32
  }
  func.func @transform_4(%arg0: i32) -> (i32, i32) {
    %c0_i32 = arith.constant 0 : i32
    %c0_i32_0 = arith.constant 0 : i32
    %c0_i32_1 = arith.constant 0 : i32
    return %c0_i32, %c0_i32_0 : i32, i32
  }
  func.func @transform_5(%arg0: i32) -> i32 {
    %c0_i32 = arith.constant 0 : i32
    %c0_i32_0 = arith.constant 0 : i32
    return %c0_i32 : i32
  }
}

</mosaic_0001>

<llo_original>
// kernel: tpu_custom_call.1
$region0: #{tpu_custom_call.1}
  #allocation0 [shape = 'u32[]', space=smem, size = 0x4, offset = 0x4, fixed_abs, tag = 'smem constant byte address 0x4 - core index']
  #allocation1 [shape = 'u32[72,128]{1,0:T(1,128)}', space=vmem, size = 0x9000, scoped, tag = 'internal scratch']
  #allocation2 [shape = 'f32[8,32]{1,0:T(8,128)}', space=vmem, size = 0x1000, scoped, tag = 'scratch operand']
  #allocation3 [shape = 'f32[8,32]{1,0:T(8,128)}', space=vmem, size = 0x1000, scoped, tag = 'scratch operand']
  %s0 = inlined_call_operand.vmem [shape: f32[2,10,32], index: 0, kind: input, shape index: {}]
  %s1 = inlined_call_operand.vmem [shape: f32[2,10,32], index: 1, kind: input, shape index: {}]
  %s2 = inlined_call_operand.vmem [shape: f32[2,9,32], index: 2, kind: input, shape index: {}]
  %s3 = inlined_call_operand.vmem [shape: f32[2,8], index: 3, kind: input, shape index: {}]
  %s4 = inlined_call_operand.vmem [shape: f32[2,8], index: 4, kind: input, shape index: {}]
  %s5 = inlined_call_operand.hbm [shape: f32[3], index: 5, kind: output, shape index: {}]
  %s6 = sld [smem:[#allocation0]]
  $region152: #{tpu_custom_call.1} parent=0
    _
  %s8 = ssub.s32 1, %s6
  %s9 = scalar_select 0, %s8, %s6
  $region1: #{tpu_custom_call.1} parent=0
    #allocation4 [shape = 'u8[65536]{0}', space=vmem, size = 0x10000, scoped, tag = 'input window, operand 0, single buffered']
    #allocation5 [shape = 'u8[65536]{0}', space=vmem, size = 0x10000, scoped, tag = 'input window, operand 1, single buffered']
    #allocation6 [shape = 'u8[65536]{0}', space=vmem, size = 0x10000, scoped, tag = 'input window, operand 2, single buffered']
    #allocation7 [shape = 'u8[512]{0}', space=smem, size = 0x200, scoped, tag = 'output window, operand 0, single buffered']
    #allocation8 [shape = 's32[1]{0}', space=sflag, size = 0x4, scoped, tag = 'scoped memory for tpu_custom_call.1']
    %10 = vsyncpa [#allocation8], 0
    // Predicated region
    $region2: #{tpu_custom_call.1} parent=1 // pred_check
      _
    $region3: #{tpu_custom_call.1} parent=1 // pred_check_branch
      %12 = sbr.rel (0) target = $region5
    $region4: #{tpu_custom_call.1} parent=1 // pred_region
      // Predicated region
      $region6: #{tpu_custom_call.1} parent=4 // pred_check
        _
      $region7: #{tpu_custom_call.1} parent=4 // pred_check_branch
        %14 = sbr.rel (0) target = $region9
      $region8: #{tpu_custom_call.1} parent=4 // pred_region
        // Predicated region
        $region10: #{tpu_custom_call.1} parent=8 // pred_check
          _
        $region11: #{tpu_custom_call.1} parent=8 // pred_check_branch
          %16 = sbr.rel (0) target = $region13
        $region12: #{tpu_custom_call.1} parent=8 // pred_region
          // Predicated region
          $region25: #{tpu_custom_call.1} parent=12 // pred_check
            _
          $region26: #{tpu_custom_call.1} parent=12 // pred_check_branch
            %38 = sbr.rel (0) target = $region28
          $region27: #{tpu_custom_call.1} parent=12 // pred_region
            loop: start=0, step=1, limit=1
            $region29: #{tpu_custom_call.1} parent=27 // loop_pre_header
              _
            $region30: #{tpu_custom_call.1} parent=27 // loop_header
              %s40 = sphi 0, %s44
              %p41 = scmp.ge.s32.totalorder %s40, 1
              %s45 = sphi %s0, %s0
              %s46 = sphi [#allocation4], [#allocation4]
            $region31: #{tpu_custom_call.1} parent=27 // loop_header_branch
              %43 = sbr.rel (%p41) target = $region35
            $region32: #{tpu_custom_call.1} parent=27 // loop_body
              %v47 = vld [vmem:[%s45] sm:$0xff]
              %48 = vst [vmem:[%s46] sm:$0xff] %v47
              %v49 = vld [vmem:[%s45 + $0x8] sm:$0xff]
              %50 = vst [vmem:[%s46 + $0x8] sm:$0xff] %v49
              %v51 = vld [vmem:[%s45 + $0x10] sm:$0xff]
              %52 = vst [vmem:[%s46 + $0x40] sm:$0xff] %v51
              %v53 = vld [vmem:[%s45 + $0x18] sm:$0xff]
              %54 = vst [vmem:[%s46 + $0x48] sm:$0xff] %v53
            $region33: #{tpu_custom_call.1} parent=27 // loop_footer
              %s44 = sadd.s32 1, %s40
            $region34: #{tpu_custom_call.1} parent=27 // loop_footer_branch
              %39 = sbr.rel target = $region30
            $region35: #{tpu_custom_call.1} parent=27 // loop_exit
              _
          $region28: #{tpu_custom_call.1} parent=12 // pred_fallthru
            _
          // Predicated region
          $region36: #{tpu_custom_call.1} parent=12 // pred_check
            _
          $region37: #{tpu_custom_call.1} parent=12 // pred_check_branch
            %56 = sbr.rel target = $region39
          $region38: #{tpu_custom_call.1} parent=12 // pred_region
            _
          $region39: #{tpu_custom_call.1} parent=12 // pred_fallthru
            _
        $region13: #{tpu_custom_call.1} parent=8 // pred_fallthru
          _
        // Predicated region
        $region14: #{tpu_custom_call.1} parent=8 // pred_check
          _
        $region15: #{tpu_custom_call.1} parent=8 // pred_check_branch
          %18 = sbr.rel target = $region17
        $region16: #{tpu_custom_call.1} parent=8 // pred_region
          %s20 = ssub.s32 256, 1
          loop: start=0, step=1, limit=1
          $region18: #{tpu_custom_call.1} parent=16 // loop_pre_header
            _
          $region19: #{tpu_custom_call.1} parent=16 // loop_header
            %s22 = sphi 0, %s26
            %p23 = scmp.ge.s32.totalorder %s22, 1
            %s27 = sphi %s0, %s0
            %s28 = sphi [#allocation4], [#allocation4]
          $region20: #{tpu_custom_call.1} parent=16 // loop_header_branch
            %25 = sbr.rel (%p23) target = $region24
          $region21: #{tpu_custom_call.1} parent=16 // loop_body
            %v29 = vld [vmem:[%s27] sm:%s20]
            %30 = vst [vmem:[%s28] sm:%s20] %v29
            %v31 = vld [vmem:[%s27 + $0x8] sm:%s20]
            %32 = vst [vmem:[%s28 + $0x8] sm:%s20] %v31
            %v33 = vld [vmem:[%s27 + $0x10] sm:%s20]
            %34 = vst [vmem:[%s28 + $0x40] sm:%s20] %v33
            %v35 = vld [vmem:[%s27 + $0x18] sm:%s20]
            %36 = vst [vmem:[%s28 + $0x48] sm:%s20] %v35
          $region22: #{tpu_custom_call.1} parent=16 // loop_footer
            %s26 = sadd.s32 1, %s22
          $region23: #{tpu_custom_call.1} parent=16 // loop_footer_branch
            %21 = sbr.rel target = $region19
          $region24: #{tpu_custom_call.1} parent=16 // loop_exit
            _
        $region17: #{tpu_custom_call.1} parent=8 // pred_fallthru
          _
      $region9: #{tpu_custom_call.1} parent=4 // pred_fallthru
        _
      %57 = vnop
    $region5: #{tpu_custom_call.1} parent=1 // pred_fallthru
      _
    // Predicated region
    $region40: #{tpu_custom_call.1} parent=1 // pred_check
      _
    $region41: #{tpu_custom_call.1} parent=1 // pred_check_branch
      %59 = sbr.rel (0) target = $region43
    $region42: #{tpu_custom_call.1} parent=1 // pred_region
      // Predicated region
      $region44: #{tpu_custom_call.1} parent=42 // pred_check
        _
      $region45: #{tpu_custom_call.1} parent=42 // pred_check_branch
        %61 = sbr.rel (0) target = $region47
      $region46: #{tpu_custom_call.1} parent=42 // pred_region
        // Predicated region
        $region48: #{tpu_custom_call.1} parent=46 // pred_check
          _
        $region49: #{tpu_custom_call.1} parent=46 // pred_check_branch
          %63 = sbr.rel (0) target = $region51
        $region50: #{tpu_custom_call.1} parent=46 // pred_region
          // Predicated region
          $region63: #{tpu_custom_call.1} parent=50 // pred_check
            _
          $region64: #{tpu_custom_call.1} parent=50 // pred_check_branch
            %85 = sbr.rel (0) target = $region66
          $region65: #{tpu_custom_call.1} parent=50 // pred_region
            loop: start=0, step=1, limit=1
            $region67: #{tpu_custom_call.1} parent=65 // loop_pre_header
              _
            $region68: #{tpu_custom_call.1} parent=65 // loop_header
              %s87 = sphi 0, %s91
              %p88 = scmp.ge.s32.totalorder %s87, 1
              %s92 = sphi %s1, %s1
              %s93 = sphi [#allocation5], [#allocation5]
            $region69: #{tpu_custom_call.1} parent=65 // loop_header_branch
              %90 = sbr.rel (%p88) target = $region73
            $region70: #{tpu_custom_call.1} parent=65 // loop_body
              %v94 = vld [vmem:[%s92] sm:$0xff]
              %95 = vst [vmem:[%s93] sm:$0xff] %v94
              %v96 = vld [vmem:[%s92 + $0x8] sm:$0xff]
              %97 = vst [vmem:[%s93 + $0x8] sm:$0xff] %v96
              %v98 = vld [vmem:[%s92 + $0x10] sm:$0xff]
              %99 = vst [vmem:[%s93 + $0x40] sm:$0xff] %v98
              %v100 = vld [vmem:[%s92 + $0x18] sm:$0xff]
              %101 = vst [vmem:[%s93 + $0x48] sm:$0xff] %v100
            $region71: #{tpu_custom_call.1} parent=65 // loop_footer
              %s91 = sadd.s32 1, %s87
            $region72: #{tpu_custom_call.1} parent=65 // loop_footer_branch
              %86 = sbr.rel target = $region68
            $region73: #{tpu_custom_call.1} parent=65 // loop_exit
              _
          $region66: #{tpu_custom_call.1} parent=50 // pred_fallthru
            _
          // Predicated region
          $region74: #{tpu_custom_call.1} parent=50 // pred_check
            _
          $region75: #{tpu_custom_call.1} parent=50 // pred_check_branch
            %103 = sbr.rel target = $region77
          $region76: #{tpu_custom_call.1} parent=50 // pred_region
            _
          $region77: #{tpu_custom_call.1} parent=50 // pred_fallthru
            _
        $region51: #{tpu_custom_call.1} parent=46 // pred_fallthru
          _
        // Predicated region
        $region52: #{tpu_custom_call.1} parent=46 // pred_check
          _
        $region53: #{tpu_custom_call.1} parent=46 // pred_check_branch
          %65 = sbr.rel target = $region55
        $region54: #{tpu_custom_call.1} parent=46 // pred_region
          %s67 = ssub.s32 256, 1
          loop: start=0, step=1, limit=1
          $region56: #{tpu_custom_call.1} parent=54 // loop_pre_header
            _
          $region57: #{tpu_custom_call.1} parent=54 // loop_header
            %s69 = sphi 0, %s73
            %p70 = scmp.ge.s32.totalorder %s69, 1
            %s74 = sphi %s1, %s1
            %s75 = sphi [#allocation5], [#allocation5]
          $region58: #{tpu_custom_call.1} parent=54 // loop_header_branch
            %72 = sbr.rel (%p70) target = $region62
          $region59: #{tpu_custom_call.1} parent=54 // loop_body
            %v76 = vld [vmem:[%s74] sm:%s67]
            %77 = vst [vmem:[%s75] sm:%s67] %v76
            %v78 = vld [vmem:[%s74 + $0x8] sm:%s67]
            %79 = vst [vmem:[%s75 + $0x8] sm:%s67] %v78
            %v80 = vld [vmem:[%s74 + $0x10] sm:%s67]
            %81 = vst [vmem:[%s75 + $0x40] sm:%s67] %v80
            %v82 = vld [vmem:[%s74 + $0x18] sm:%s67]
            %83 = vst [vmem:[%s75 + $0x48] sm:%s67] %v82
          $region60: #{tpu_custom_call.1} parent=54 // loop_footer
            %s73 = sadd.s32 1, %s69
          $region61: #{tpu_custom_call.1} parent=54 // loop_footer_branch
            %68 = sbr.rel target = $region57
          $region62: #{tpu_custom_call.1} parent=54 // loop_exit
            _
        $region55: #{tpu_custom_call.1} parent=46 // pred_fallthru
          _
      $region47: #{tpu_custom_call.1} parent=42 // pred_fallthru
        _
      %104 = vnop
    $region43: #{tpu_custom_call.1} parent=1 // pred_fallthru
      _
    // Predicated region
    $region78: #{tpu_custom_call.1} parent=1 // pred_check
      _
    $region79: #{tpu_custom_call.1} parent=1 // pred_check_branch
      %106 = sbr.rel (0) target = $region81
    $region80: #{tpu_custom_call.1} parent=1 // pred_region
      // Predicated region
      $region82: #{tpu_custom_call.1} parent=80 // pred_check
        _
      $region83: #{tpu_custom_call.1} parent=80 // pred_check_branch
        %108 = sbr.rel (0) target = $region85
      $region84: #{tpu_custom_call.1} parent=80 // pred_region
        // Predicated region
        $region86: #{tpu_custom_call.1} parent=84 // pred_check
          _
        $region87: #{tpu_custom_call.1} parent=84 // pred_check_branch
          %110 = sbr.rel (0) target = $region89
        $region88: #{tpu_custom_call.1} parent=84 // pred_region
          // Predicated region
          $region101: #{tpu_custom_call.1} parent=88 // pred_check
            _
          $region102: #{tpu_custom_call.1} parent=88 // pred_check_branch
            %132 = sbr.rel (0) target = $region104
          $region103: #{tpu_custom_call.1} parent=88 // pred_region
            loop: start=0, step=1, limit=1
            $region105: #{tpu_custom_call.1} parent=103 // loop_pre_header
              _
            $region106: #{tpu_custom_call.1} parent=103 // loop_header
              %s134 = sphi 0, %s138
              %p135 = scmp.ge.s32.totalorder %s134, 1
              %s139 = sphi %s2, %s2
              %s140 = sphi [#allocation6], [#allocation6]
            $region107: #{tpu_custom_call.1} parent=103 // loop_header_branch
              %137 = sbr.rel (%p135) target = $region111
            $region108: #{tpu_custom_call.1} parent=103 // loop_body
              %v141 = vld [vmem:[%s139] sm:$0xff]
              %142 = vst [vmem:[%s140] sm:$0xff] %v141
              %v143 = vld [vmem:[%s139 + $0x8] sm:$0xff]
              %144 = vst [vmem:[%s140 + $0x8] sm:$0xff] %v143
              %v145 = vld [vmem:[%s139 + $0x10] sm:$0xff]
              %146 = vst [vmem:[%s140 + $0x40] sm:$0xff] %v145
              %v147 = vld [vmem:[%s139 + $0x18] sm:$0xff]
              %148 = vst [vmem:[%s140 + $0x48] sm:$0xff] %v147
            $region109: #{tpu_custom_call.1} parent=103 // loop_footer
              %s138 = sadd.s32 1, %s134
            $region110: #{tpu_custom_call.1} parent=103 // loop_footer_branch
              %133 = sbr.rel target = $region106
            $region111: #{tpu_custom_call.1} parent=103 // loop_exit
              _
          $region104: #{tpu_custom_call.1} parent=88 // pred_fallthru
            _
          // Predicated region
          $region112: #{tpu_custom_call.1} parent=88 // pred_check
            _
          $region113: #{tpu_custom_call.1} parent=88 // pred_check_branch
            %150 = sbr.rel target = $region115
          $region114: #{tpu_custom_call.1} parent=88 // pred_region
            _
          $region115: #{tpu_custom_call.1} parent=88 // pred_fallthru
            _
        $region89: #{tpu_custom_call.1} parent=84 // pred_fallthru
          _
        // Predicated region
        $region90: #{tpu_custom_call.1} parent=84 // pred_check
          _
        $region91: #{tpu_custom_call.1} parent=84 // pred_check_branch
          %112 = sbr.rel target = $region93
        $region92: #{tpu_custom_call.1} parent=84 // pred_region
          %s114 = ssub.s32 256, 1
          loop: start=0, step=1, limit=1
          $region94: #{tpu_custom_call.1} parent=92 // loop_pre_header
            _
          $region95: #{tpu_custom_call.1} parent=92 // loop_header
            %s116 = sphi 0, %s120
            %p117 = scmp.ge.s32.totalorder %s116, 1
            %s121 = sphi %s2, %s2
            %s122 = sphi [#allocation6], [#allocation6]
          $region96: #{tpu_custom_call.1} parent=92 // loop_header_branch
            %119 = sbr.rel (%p117) target = $region100
          $region97: #{tpu_custom_call.1} parent=92 // loop_body
            %v123 = vld [vmem:[%s121] sm:%s114]
            %124 = vst [vmem:[%s122] sm:%s114] %v123
            %v125 = vld [vmem:[%s121 + $0x8] sm:%s114]
            %126 = vst [vmem:[%s122 + $0x8] sm:%s114] %v125
            %v127 = vld [vmem:[%s121 + $0x10] sm:%s114]
            %128 = vst [vmem:[%s122 + $0x40] sm:%s114] %v127
            %v129 = vld [vmem:[%s121 + $0x18] sm:%s114]
            %130 = vst [vmem:[%s122 + $0x48] sm:%s114] %v129
          $region98: #{tpu_custom_call.1} parent=92 // loop_footer
            %s120 = sadd.s32 1, %s116
          $region99: #{tpu_custom_call.1} parent=92 // loop_footer_branch
            %115 = sbr.rel target = $region95
          $region100: #{tpu_custom_call.1} parent=92 // loop_exit
            _
        $region93: #{tpu_custom_call.1} parent=84 // pred_fallthru
          _
      $region85: #{tpu_custom_call.1} parent=80 // pred_fallthru
        _
      %151 = vnop
    $region81: #{tpu_custom_call.1} parent=1 // pred_fallthru
      _
    // Predicated region
    $region116: #{tpu_custom_call.1} parent=1 // pred_check
      _
    $region117: #{tpu_custom_call.1} parent=1 // pred_check_branch
      %153 = sbr.rel (0) target = $region119
    $region118: #{tpu_custom_call.1} parent=1 // pred_region
      _
    $region119: #{tpu_custom_call.1} parent=1 // pred_fallthru
      _
    // Predicated region
    $region120: #{tpu_custom_call.1} parent=1 // pred_check
      _
    $region121: #{tpu_custom_call.1} parent=1 // pred_check_branch
      %155 = sbr.rel (0) target = $region123
    $region122: #{tpu_custom_call.1} parent=1 // pred_region
      _
    $region123: #{tpu_custom_call.1} parent=1 // pred_fallthru
      _
    // Predicated region
    $region124: #{tpu_custom_call.1} parent=1 // pred_check
      _
    $region125: #{tpu_custom_call.1} parent=1 // pred_check_branch
      %157 = sbr.rel (0) target = $region127
    $region126: #{tpu_custom_call.1} parent=1 // pred_region
      _
    $region127: #{tpu_custom_call.1} parent=1 // pred_fallthru
      _
    // Predicated region
    $region128: #{tpu_custom_call.1} parent=1 // pred_check
      _
    $region129: #{tpu_custom_call.1} parent=1 // pred_check_branch
      %159 = sbr.rel (0) target = $region131
    $region130: #{tpu_custom_call.1} parent=1 // pred_region
      _
    $region131: #{tpu_custom_call.1} parent=1 // pred_fallthru
      _
    // Predicated region
    $region132: #{tpu_custom_call.1} parent=1 // pred_check
      _
    $region133: #{tpu_custom_call.1} parent=1 // pred_check_branch
      %161 = sbr.rel (0) target = $region135
    $region134: #{tpu_custom_call.1} parent=1 // pred_region
      _
    $region135: #{tpu_custom_call.1} parent=1 // pred_fallthru
      _
    %p162 = scmp.eq.s32.totalorder 0, 0
    // Predicated region
    $region136: #{tpu_custom_call.1} parent=1 // pred_check
      %p163 = pneg %p162
    $region137: #{tpu_custom_call.1} parent=1 // pred_check_branch
      %165 = sbr.rel (%p163) target = $region139
    $region138: #{tpu_custom_call.1} parent=1 // pred_region
      %vm166 = vcmask 261120
      %167 = vst.msk [vmem:[#allocation2] sm:$0xff] %vm166, 0.0
      %168 = vst.msk [vmem:[#allocation3] sm:$0xff] %vm166, 0.0
    $region139: #{tpu_custom_call.1} parent=1 // pred_fallthru
      _
    %s169 = smul.u32 0, 64
    %v170 = vlaneseq
    %v171 = vshrl.u32 %v170, 7
    %v172 = vadd.s32 %v171, 8
    %v173 = vadd.s32 %v171, 16
    %v174 = vadd.s32 %v171, 24
    %v175 = vadd.s32 %v171, 32
    %v176 = vadd.s32 %v171, 40
    %v177 = vadd.s32 %v171, 48
    %v178 = vadd.s32 %v171, 56
    %v179 = vld [vmem:[#allocation6] sm:$0xff]
    %v180 = vld [vmem:[#allocation6 + $0x8] sm:$0xff]
    %v181 = vld [vmem:[#allocation6 + $0x10] sm:$0xff]
    %v182 = vld [vmem:[#allocation6 + $0x18] sm:$0xff]
    %v183 = vld [vmem:[#allocation6 + $0x20] sm:$0xff]
    %v184 = vld [vmem:[#allocation6 + $0x28] sm:$0xff]
    %v185 = vld [vmem:[#allocation6 + $0x30] sm:$0xff]
    %v186 = vld [vmem:[#allocation6 + $0x38] sm:$0xff]
    %v187 = vld [vmem:[#allocation6 + $0x40] sm:$0xff]
    %v188 = vld [vmem:[#allocation6 + $0x48] sm:$0xff]
    %v189 = vld [vmem:[#allocation6 + $0x50] sm:$0xff]
    %v190 = vld [vmem:[#allocation6 + $0x58] sm:$0xff]
    %v191 = vld [vmem:[#allocation6 + $0x60] sm:$0xff]
    %v192 = vld [vmem:[#allocation6 + $0x68] sm:$0xff]
    %v193 = vld [vmem:[#allocation6 + $0x70] sm:$0xff]
    %v194 = vld [vmem:[#allocation6 + $0x78] sm:$0xff]
    %v195 = vld [vmem:[#allocation4] sm:$0xff]
    %v196 = vld [vmem:[#allocation4 + $0x8] sm:$0xff]
    %v197 = vld [vmem:[#allocation4 + $0x10] sm:$0xff]
    %v198 = vld [vmem:[#allocation4 + $0x18] sm:$0xff]
    %v199 = vld [vmem:[#allocation4 + $0x20] sm:$0xff]
    %v200 = vld [vmem:[#allocation4 + $0x28] sm:$0xff]
    %v201 = vld [vmem:[#allocation4 + $0x30] sm:$0xff]
    %v202 = vld [vmem:[#allocation4 + $0x38] sm:$0xff]
    %v203 = vld [vmem:[#allocation4 + $0x40] sm:$0xff]
    %v204 = vld [vmem:[#allocation4 + $0x48] sm:$0xff]
    %v205 = vld [vmem:[#allocation4 + $0x50] sm:$0xff]
    %v206 = vld [vmem:[#allocation4 + $0x58] sm:$0xff]
    %v207 = vld [vmem:[#allocation4 + $0x60] sm:$0xff]
    %v208 = vld [vmem:[#allocation4 + $0x68] sm:$0xff]
    %v209 = vld [vmem:[#allocation4 + $0x70] sm:$0xff]
    %v210 = vld [vmem:[#allocation4 + $0x78] sm:$0xff]
    %v211 = vsub.f32 %v195, %v179
    %v212 = vsub.f32 %v196, %v180
    %v213 = vsub.f32 %v197, %v181
    %v214 = vsub.f32 %v198, %v182
    %v215 = vsub.f32 %v199, %v183
    %v216 = vsub.f32 %v200, %v184
    %v217 = vsub.f32 %v201, %v185
    %v218 = vsub.f32 %v202, %v186
    %v219 = vsub.f32 %v203, %v187
    %v220 = vsub.f32 %v204, %v188
    %v221 = vsub.f32 %v205, %v189
    %v222 = vsub.f32 %v206, %v190
    %v223 = vsub.f32 %v207, %v191
    %v224 = vsub.f32 %v208, %v192
    %v225 = vsub.f32 %v209, %v193
    %v226 = vsub.f32 %v210, %v194
    %v227 = vand.u32 2147483647, %v211
    %v228 = vand.u32 2147483647, %v212
    %v229 = vand.u32 2147483647, %v213
    %v230 = vand.u32 2147483647, %v214
    %v231 = vand.u32 2147483647, %v215
    %v232 = vand.u32 2147483647, %v216
    %v233 = vand.u32 2147483647, %v217
    %v234 = vand.u32 2147483647, %v218
    %v235 = vand.u32 2147483647, %v219
    %v236 = vand.u32 2147483647, %v220
    %v237 = vand.u32 2147483647, %v221
    %v238 = vand.u32 2147483647, %v222
    %v239 = vand.u32 2147483647, %v223
    %v240 = vand.u32 2147483647, %v224
    %v241 = vand.u32 2147483647, %v225
    %v242 = vand.u32 2147483647, %v226
    %v243 = vld [vmem:[#allocation5] sm:$0xff]
    %v244 = vld [vmem:[#allocation5 + $0x8] sm:$0xff]
    %v245 = vld [vmem:[#allocation5 + $0x10] sm:$0xff]
    %v246 = vld [vmem:[#allocation5 + $0x18] sm:$0xff]
    %v247 = vld [vmem:[#allocation5 + $0x20] sm:$0xff]
    %v248 = vld [vmem:[#allocation5 + $0x28] sm:$0xff]
    %v249 = vld [vmem:[#allocation5 + $0x30] sm:$0xff]
    %v250 = vld [vmem:[#allocation5 + $0x38] sm:$0xff]
    %v251 = vld [vmem:[#allocation5 + $0x40] sm:$0xff]
    %v252 = vld [vmem:[#allocation5 + $0x48] sm:$0xff]
    %v253 = vld [vmem:[#allocation5 + $0x50] sm:$0xff]
    %v254 = vld [vmem:[#allocation5 + $0x58] sm:$0xff]
    %v255 = vld [vmem:[#allocation5 + $0x60] sm:$0xff]
    %v256 = vld [vmem:[#allocation5 + $0x68] sm:$0xff]
    %v257 = vld [vmem:[#allocation5 + $0x70] sm:$0xff]
    %v258 = vld [vmem:[#allocation5 + $0x78] sm:$0xff]
    %v259 = vsub.f32 %v243, %v179
    %v260 = vsub.f32 %v244, %v180
    %v261 = vsub.f32 %v245, %v181
    %v262 = vsub.f32 %v246, %v182
    %v263 = vsub.f32 %v247, %v183
    %v264 = vsub.f32 %v248, %v184
    %v265 = vsub.f32 %v249, %v185
    %v266 = vsub.f32 %v250, %v186
    %v267 = vsub.f32 %v251, %v187
    %v268 = vsub.f32 %v252, %v188
    %v269 = vsub.f32 %v253, %v189
    %v270 = vsub.f32 %v254, %v190
    %v271 = vsub.f32 %v255, %v191
    %v272 = vsub.f32 %v256, %v192
    %v273 = vsub.f32 %v257, %v193
    %v274 = vsub.f32 %v258, %v194
    %v275 = vand.u32 2147483647, %v259
    %v276 = vand.u32 2147483647, %v260
    %v277 = vand.u32 2147483647, %v261
    %v278 = vand.u32 2147483647, %v262
    %v279 = vand.u32 2147483647, %v263
    %v280 = vand.u32 2147483647, %v264
    %v281 = vand.u32 2147483647, %v265
    %v282 = vand.u32 2147483647, %v266
    %v283 = vand.u32 2147483647, %v267
    %v284 = vand.u32 2147483647, %v268
    %v285 = vand.u32 2147483647, %v269
    %v286 = vand.u32 2147483647, %v270
    %v287 = vand.u32 2147483647, %v271
    %v288 = vand.u32 2147483647, %v272
    %v289 = vand.u32 2147483647, %v273
    %v290 = vand.u32 2147483647, %v274
    %v291 = vstv %s169
    %v292 = vadd.s32 %v291, %v171
    %v293 = vadd.s32 %v291, %v172
    %v294 = vadd.s32 %v291, %v173
    %v295 = vadd.s32 %v291, %v174
    %v296 = vadd.s32 %v291, %v175
    %v297 = vadd.s32 %v291, %v176
    %v298 = vadd.s32 %v291, %v177
    %v299 = vadd.s32 %v291, %v178
    %vm300 = vcmp.lt.s32.totalorder %v292, 9
    %vm301 = vcmp.lt.s32.totalorder %v293, 9
    %vm302 = vcmp.lt.s32.totalorder %v294, 9
    %vm303 = vcmp.lt.s32.totalorder %v295, 9
    %vm304 = vcmp.lt.s32.totalorder %v296, 9
    %vm305 = vcmp.lt.s32.totalorder %v297, 9
    %vm306 = vcmp.lt.s32.totalorder %v298, 9
    %vm307 = vcmp.lt.s32.totalorder %v299, 9
    %v308 = vsel %vm300, %v227, 0.0
    %v309 = vsel %vm301, %v228, 0.0
    %v310 = vsel %vm302, %v229, 0.0
    %v311 = vsel %vm303, %v230, 0.0
    %v312 = vsel %vm304, %v231, 0.0
    %v313 = vsel %vm305, %v232, 0.0
    %v314 = vsel %vm306, %v233, 0.0
    %v315 = vsel %vm307, %v234, 0.0
    %v316 = vsel %vm300, %v235, 0.0
    %v317 = vsel %vm301, %v236, 0.0
    %v318 = vsel %vm302, %v237, 0.0
    %v319 = vsel %vm303, %v238, 0.0
    %v320 = vsel %vm304, %v239, 0.0
    %v321 = vsel %vm305, %v240, 0.0
    %v322 = vsel %vm306, %v241, 0.0
    %v323 = vsel %vm307, %v242, 0.0
    %v324 = vsel %vm300, %v275, 0.0
    %v325 = vsel %vm301, %v276, 0.0
    %v326 = vsel %vm302, %v277, 0.0
    %v327 = vsel %vm303, %v278, 0.0
    %v328 = vsel %vm304, %v279, 0.0
    %v329 = vsel %vm305, %v280, 0.0
    %v330 = vsel %vm306, %v281, 0.0
    %v331 = vsel %vm307, %v282, 0.0
    %v332 = vsel %vm300, %v283, 0.0
    %v333 = vsel %vm301, %v284, 0.0
    %v334 = vsel %vm302, %v285, 0.0
    %v335 = vsel %vm303, %v286, 0.0
    %v336 = vsel %vm304, %v287, 0.0
    %v337 = vsel %vm305, %v288, 0.0
    %v338 = vsel %vm306, %v289, 0.0
    %v339 = vsel %vm307, %v290, 0.0
    %vm340 = vcmask 261120
    %v341 = vsel %vm340, %v308, 0.0
    %v342 = vsel %vm340, %v309, 0.0
    %v343 = vadd.f32 %v341, %v342
    %v344 = vsel %vm340, %v310, 0.0
    %v345 = vadd.f32 %v343, %v344
    %v346 = vsel %vm340, %v311, 0.0
    %v347 = vadd.f32 %v345, %v346
    %v348 = vsel %vm340, %v312, 0.0
    %v349 = vadd.f32 %v347, %v348
    %v350 = vsel %vm340, %v313, 0.0
    %v351 = vadd.f32 %v349, %v350
    %v352 = vsel %vm340, %v314, 0.0
    %v353 = vadd.f32 %v351, %v352
    %v354 = vsel %vm340, %v315, 0.0
    %v355 = vadd.f32 %v353, %v354
    %v356 = vsel %vm340, %v316, 0.0
    %v357 = vadd.f32 %v355, %v356
    %v358 = vsel %vm340, %v317, 0.0
    %v359 = vadd.f32 %v357, %v358
    %v360 = vsel %vm340, %v318, 0.0
    %v361 = vadd.f32 %v359, %v360
    %v362 = vsel %vm340, %v319, 0.0
    %v363 = vadd.f32 %v361, %v362
    %v364 = vsel %vm340, %v320, 0.0
    %v365 = vadd.f32 %v363, %v364
    %v366 = vsel %vm340, %v321, 0.0
    %v367 = vadd.f32 %v365, %v366
    %v368 = vsel %vm340, %v322, 0.0
    %v369 = vadd.f32 %v367, %v368
    %v370 = vsel %vm340, %v323, 0.0
    %v371 = vadd.f32 %v369, %v370
    %v372 = vadd.f32 %v371, 0.0
    %v373 = vsel %vm340, %v324, 0.0
    %v374 = vsel %vm340, %v325, 0.0
    %v375 = vadd.f32 %v373, %v374
    %v376 = vsel %vm340, %v326, 0.0
    %v377 = vadd.f32 %v375, %v376
    %v378 = vsel %vm340, %v327, 0.0
    %v379 = vadd.f32 %v377, %v378
    %v380 = vsel %vm340, %v328, 0.0
    %v381 = vadd.f32 %v379, %v380
    %v382 = vsel %vm340, %v329, 0.0
    %v383 = vadd.f32 %v381, %v382
    %v384 = vsel %vm340, %v330, 0.0
    %v385 = vadd.f32 %v383, %v384
    %v386 = vsel %vm340, %v331, 0.0
    %v387 = vadd.f32 %v385, %v386
    %v388 = vsel %vm340, %v332, 0.0
    %v389 = vadd.f32 %v387, %v388
    %v390 = vsel %vm340, %v333, 0.0
    %v391 = vadd.f32 %v389, %v390
    %v392 = vsel %vm340, %v334, 0.0
    %v393 = vadd.f32 %v391, %v392
    %v394 = vsel %vm340, %v335, 0.0
    %v395 = vadd.f32 %v393, %v394
    %v396 = vsel %vm340, %v336, 0.0
    %v397 = vadd.f32 %v395, %v396
    %v398 = vsel %vm340, %v337, 0.0
    %v399 = vadd.f32 %v397, %v398
    %v400 = vsel %vm340, %v338, 0.0
    %v401 = vadd.f32 %v399, %v400
    %v402 = vsel %vm340, %v339, 0.0
    %v403 = vadd.f32 %v401, %v402
    %v404 = vadd.f32 %v403, 0.0
    %v405 = vld [vmem:[#allocation2] sm:$0xff]
    %v406 = vadd.f32 %v405, %v372
    %407 = vst.msk [vmem:[#allocation2] sm:$0xff] %vm340, %v406
    %v408 = vld [vmem:[#allocation3] sm:$0xff]
    %v409 = vadd.f32 %v408, %v404
    %410 = vst.msk [vmem:[#allocation3] sm:$0xff] %vm340, %v409
    // Predicated region
    $region140: #{tpu_custom_call.1} parent=1 // pred_check
      %p411 = pneg %p162
    $region141: #{tpu_custom_call.1} parent=1 // pred_check_branch
      %413 = sbr.rel (%p411) target = $region143
    $region142: #{tpu_custom_call.1} parent=1 // pred_region
      %v414 = vld [vmem:[#allocation2] sm:$0xff]
      %v415 = vsel %vm340, %v414, 0.0
      %416 = vadd.xlane.f32.xlu0 %v415
      %v417 = vpop.xlane.xlu0 %416
      %v418 = vrot.slane %v417, 4
      %v419 = vadd.f32 %v417, %v418
      %v420 = vrot.slane %v419, 2
      %v421 = vadd.f32 %v419, %v420
      %v422 = vrot.slane %v421, 1
      %v423 = vadd.f32 %v421, %v422
      %s424 = vtos %v423
      %s425 = smul.f32 %s424, 0.0017361111
      %s426 = scalar_lea.smem [#allocation7], 0
      %427 = sst [smem:[%s426]] %s425
      %v428 = vld [vmem:[#allocation3] sm:$0xff]
      %v429 = vsel %vm340, %v428, 0.0
      %430 = vadd.xlane.f32.xlu0 %v429
      %v431 = vpop.xlane.xlu0 %430
      %v432 = vrot.slane %v431, 4
      %v433 = vadd.f32 %v431, %v432
      %v434 = vrot.slane %v433, 2
      %v435 = vadd.f32 %v433, %v434
      %v436 = vrot.slane %v435, 1
      %v437 = vadd.f32 %v435, %v436
      %s438 = vtos %v437
      %s439 = smul.f32 %s438, 0.0017361111
      %s440 = scalar_lea.smem [#allocation7], 1
      %441 = sst [smem:[%s440]] %s439
      %v442 = vld [vmem:[%s3] sm:$0x3]
      %v443 = vld [vmem:[%s4] sm:$0x3]
      %v444 = vadd.f32 %v443, 1.0
      %v445 = vlog2.pop %v444
      %v446 = vmul.f32 %v445, 0.6931472
      %v447 = vmul.f32 -0.5, %v443
      %v448 = vadd.f32 %v447, 1.0
      %v449 = vmul.f32 %v448, %v443
      %v450 = vand.u32 2147483647, %v443
      %vm451 = vcmp.lt.f32.partialorder %v450, 0.0004427343
      %v452 = vsel %vm451, %v449, %v446
      %v453 = vsub.f32 %v442, %v452
      %v454 = vmul.f32 %v453, %v453
      %vm455 = vcmask 58368
      %v456 = vsel %vm455, %v454, 0.0
      %457 = vadd.xlane.f32.xlu0 %v456
      %v458 = vpop.xlane.xlu0 %457
      %v459 = vrot.slane %v458, 4
      %v460 = vadd.f32 %v458, %v459
      %v461 = vrot.slane %v460, 2
      %v462 = vadd.f32 %v460, %v461
      %v463 = vrot.slane %v462, 1
      %v464 = vadd.f32 %v462, %v463
      %s465 = vtos %v464
      %s466 = smul.f32 %s465, 0.0625
      %s467 = scalar_lea.smem [#allocation7], 2
      %468 = sst [smem:[%s467]] %s466
    $region143: #{tpu_custom_call.1} parent=1 // pred_fallthru
      _
    // Predicated region
    $region144: #{tpu_custom_call.1} parent=1 // pred_check
      _
    $region145: #{tpu_custom_call.1} parent=1 // pred_check_branch
      %470 = sbr.rel (0) target = $region147
    $region146: #{tpu_custom_call.1} parent=1 // pred_region
      %472 = vsyncadd [#allocation8], 0
      %s474 = sshll.u32 %s5, 4
      %s475 = int_to_ptr.hbm [resolvable:$true] %s474
      %477 = dma.smem_to_hbm [#allocation7], 16, %s475, [#allocation8]
    $region147: #{tpu_custom_call.1} parent=1 // pred_fallthru
      _
    // Predicated region
    $region148: #{tpu_custom_call.1} parent=1 // pred_check
      _
    $region149: #{tpu_custom_call.1} parent=1 // pred_check_branch
      %479 = sbr.rel (0) target = $region151
    $region150: #{tpu_custom_call.1} parent=1 // pred_region
      %481 = dma.done [#allocation8], 16
    $region151: #{tpu_custom_call.1} parent=1 // pred_fallthru
      _
    %482 = sfence
    %483 = vsyncpa [#allocation8], 1

</llo_original>
